<compile_context>
chip_gen: v6e
topology: v6e:2x2x1
jax: 0.10.0
libtpu: 0.0.40
codegen_flags: <defaults>
</compile_context>

<pallas_src>
import math
from functools import partial

import jax
import jax.numpy as jnp
from jax.experimental import pallas as pl
from jax.experimental.pallas import tpu as pltpu


_LANE = 128
_SUBLANE = 8
_MIB = 1024 * 1024
_HEADROOM = 6 * _MIB          # slack for Mosaic internal scratch / misc blocks


def _round_up(v, m):
    return (v + m - 1) // m * m


def _usable_vmem_bytes():
    """Generation-aware VMEM budget: ~85% of physical VMEM (≈108 MiB on
    v5e/v6e's 128 MiB, ≈54 MiB on v7x's 64 MiB).  Falls back to a v7x-safe
    64 MiB physical assumption if the query is unavailable."""
    cap = 64 * _MIB
    try:
        info = pltpu.get_tpu_info()
        cap = int(getattr(info, "vmem_capacity_bytes", cap))
    except Exception:
        pass
    return int(cap * 0.85)


def _fixed_vmem_bytes(n_pad, tn):
    """VMEM resident regardless of the A^T strategy."""
    scratch = _SUBLANE * n_pad * (2 + 4 + 4)   # t_prev bf16, t_new f32, acc f32
    t0 = 2 * _SUBLANE * n_pad * 4              # double-buffered resident T_0
    out = 2 * _SUBLANE * tn * 4                # double-buffered out strip
    return scratch + t0 + out


# --------------------------------------------------------------------------- #
# Score kernel: K-hop total-communicability propagation of T_0 = Linear(x).
# Grid = (K hops, J column strips of A^T); lane axis = node index.
# --------------------------------------------------------------------------- #
def _score_kernel(tn, resident, inv_ref, t0_ref, at_ref, out_ref,
                  t_prev, t_new, acc, *res_scratch):
    k = pl.program_id(0)
    j = pl.program_id(1)

    if resident:
        # A^T lives single-buffered in VMEM scratch; fetched from HBM once.
        a_vmem, a_sem = res_scratch

        @pl.when((k == 0) & (j == 0))
        def _fetch_a():
            cp = pltpu.make_async_copy(at_ref, a_vmem, a_sem.at[0])
            cp.start()
            cp.wait()

        a_blk = a_vmem
    else:
        a_blk = at_ref          # (n_pad, tn) strip, auto-pipelined by BlockSpec

    @pl.when((k == 0) & (j == 0))
    def _init():
        t0 = t0_ref[...]        # T_0 precomputed in the wrapper, 8 equal rows
        t_new[...] = t0
        acc[...] = t0

    @pl.when(j == 0)
    def _advance():
        # t_new holds the complete T_k; snapshot once per hop, already in bf16
        # so the per-strip matmul needs no cast.
        t_prev[...] = t_new[...].astype(jnp.bfloat16)

    # T_{k+1}[:, strip j] = (T_k @ A^T[:, strip j]) * 1/(k+1)
    inv_hop = inv_ref[k]
    t_tile = jnp.dot(t_prev[...], a_blk[...],
                     preferred_element_type=jnp.float32) * inv_hop

    col = pl.multiple_of(j * tn, _LANE)
    acc_tile = acc[:, pl.ds(col, tn)] + t_tile
    t_new[:, pl.ds(col, tn)] = t_tile
    acc[:, pl.ds(col, tn)] = acc_tile
    out_ref[...] = acc_tile                 # lane-dense (8, TN) unmasked store


def compute_scores(inv_hops, t0, at, *, K, tn, resident, vmem_limit):
    """Lane-major total-communicability scores, shape [8, n_pad] (rows equal)."""
    _, n_pad = t0.shape
    j_tiles = n_pad // tn

    if resident:
        a_spec = pl.BlockSpec(memory_space=pl.ANY)          # raw HBM ref
        extra_scratch = [pltpu.VMEM((n_pad, n_pad), jnp.bfloat16),
                         pltpu.SemaphoreType.DMA((1,))]
    else:
        # contiguous (J, n_pad, tn) strips; leading dim squeezed in the kernel
        a_spec = pl.BlockSpec((None, n_pad, tn), lambda k, j: (j, 0, 0))
        extra_scratch = []

    kernel = partial(_score_kernel, tn, resident)
    return pl.pallas_call(
        kernel,
        out_shape=jax.ShapeDtypeStruct((_SUBLANE, n_pad), jnp.float32),
        grid_spec=pltpu.PrefetchScalarGridSpec(
            num_scalar_prefetch=0,
            grid=(K, j_tiles),
            in_specs=[
                pl.BlockSpec(memory_space=pltpu.MemorySpace.SMEM),      # 1/(k+1)
                pl.BlockSpec((_SUBLANE, n_pad), lambda k, j: (0, 0)),   # T_0
                a_spec,                                                 # A^T
            ],
            out_specs=pl.BlockSpec((_SUBLANE, tn), lambda k, j: (0, j)),
            scratch_shapes=[pltpu.VMEM((_SUBLANE, n_pad), jnp.bfloat16),  # t_prev
                            pltpu.VMEM((_SUBLANE, n_pad), jnp.float32),   # t_new
                            pltpu.VMEM((_SUBLANE, n_pad), jnp.float32)]   # acc
                           + extra_scratch,
        ),
        # Both axes carry state through the VMEM scratch vectors (hop k depends
        # on all strips of hop k-1), so neither axis may be megacore-sharded.
        compiler_params=pltpu.CompilerParams(
            dimension_semantics=("arbitrary", "arbitrary"),
            vmem_limit_bytes=int(vmem_limit)),
    )(inv_hops, t0, at)


def graph_scores(x, edge_index, w, b, *, K, _force_stream_tn=None):
    """Per-node scores of the total_communicability_pool score path (Pallas)."""
    N, C = x.shape
    row = edge_index[0].astype(jnp.int32)
    col = edge_index[1].astype(jnp.int32)

    n128 = _round_up(N, _LANE)
    usable = _usable_vmem_bytes()

    # Resident-A path: full bf16 A^T single-buffered in VMEM, DMA'd once.
    resident_need = n128 * n128 * 2 + _fixed_vmem_bytes(n128, n128) + _HEADROOM
    resident = (_force_stream_tn is None) and (resident_need <= usable)

    if resident:
        tn = n_pad = n128
        at = jnp.zeros((n_pad, n_pad), dtype=jnp.bfloat16)
        # Padded nodes have zero rows/cols; duplicate edges collapse to 1
        # (same convention as the internal reference).
        at = at.at[col, row].set(jnp.bfloat16(1.0))
        vmem_need = resident_need
    else:
        # Streaming path: A^T laid out as contiguous (J, n_pad, tn) strips so
        # each strip is one dense DMA (double-buffered by the pipeline).
        if _force_stream_tn is not None:
            tn = max(_LANE, min(n128, _round_up(_force_stream_tn, _LANE)))
        else:
            avail = usable - _fixed_vmem_bytes(n128, _LANE) - _HEADROOM
            tn = max(_LANE, min(n128, (avail // (4 * n128)) // _LANE * _LANE))
        while tn > _LANE:
            n_pad = _round_up(n128, tn)
            if 4 * n_pad * tn + _fixed_vmem_bytes(n_pad, tn) + _HEADROOM <= usable:
                break
            tn -= _LANE
        # TODO(synk): for extremely large N (>~100k nodes) the contraction dim
        #             of the strip should also be tiled; not needed here.
        n_pad = _round_up(n128, tn)
        j_tiles = n_pad // tn
        at = jnp.zeros((j_tiles, n_pad, tn), dtype=jnp.bfloat16)
        at = at.at[row // tn, col, row % tn].set(jnp.bfloat16(1.0))
        vmem_need = 4 * n_pad * tn + _fixed_vmem_bytes(n_pad, tn) + _HEADROOM

    vmem_limit = int(min(max(vmem_need, 32 * _MIB), usable))

    # T_0 = Linear(x), hoisted out of the kernel (keeps x^T out of VMEM).
    w_vec = jnp.asarray(w, jnp.float32).reshape(C)
    b_sc = jnp.asarray(b, jnp.float32).reshape(())
    s0 = x.astype(jnp.float32) @ w_vec + b_sc                       # (N,)
    t0 = jnp.zeros((_SUBLANE, n_pad), jnp.float32)
    t0 = t0.at[:, :N].set(jnp.broadcast_to(s0[None, :], (_SUBLANE, N)))

    # Precomputed 1/(k+1) table (read from SMEM inside the kernel).
    inv_hops = 1.0 / jnp.arange(1, K + 1, dtype=jnp.float32)

    score_pad = compute_scores(inv_hops, t0, at, K=K, tn=tn,
                               resident=resident, vmem_limit=vmem_limit)
    return score_pad[0, :N]


# --------------------------------------------------------------------------- #
# Gating kernel: x[perm] * tanh(score[perm]).
# --------------------------------------------------------------------------- #
def _gate_kernel(xs_ref, ss_ref, out_ref):
    out_ref[...] = xs_ref[...] * jnp.tanh(ss_ref[...])


def gate_selected(x_sel, score_sel, *, row_tile=256):
    ksel, c = x_sel.shape
    s_col = score_sel.reshape(ksel, 1).astype(x_sel.dtype)
    if ksel * c < 256 * 1024:
        # Small/medium selection: a pallas_call is pure launch overhead; let
        # XLA fuse the elementwise gate with the gathers.
        return x_sel * jnp.tanh(s_col)
    # Lane-dense output slab: pad the feature dim to 128 lanes (unmasked vst).
    c_pad = _round_up(c, _LANE)
    x_pad = x_sel if c_pad == c else jnp.pad(x_sel, ((0, 0), (0, c_pad - c)))
    tm = ksel if ksel <= row_tile else row_tile
    out = pl.pallas_call(
        _gate_kernel,
        out_shape=jax.ShapeDtypeStruct((ksel, c_pad), x_sel.dtype),
        grid_spec=pltpu.PrefetchScalarGridSpec(
            num_scalar_prefetch=0,
            grid=(pl.cdiv(ksel, tm),),
            in_specs=[pl.BlockSpec((tm, c_pad), lambda i: (i, 0)),
                      pl.BlockSpec((tm, 1), lambda i: (i, 0))],
            out_specs=pl.BlockSpec((tm, c_pad), lambda i: (i, 0)),
        ),
        compiler_params=pltpu.CompilerParams(
            dimension_semantics=("parallel",)),
    )(x_pad, s_col)
    return out[:, :c]


# --------------------------------------------------------------------------- #
# Forward pass (matches total_communicability_pool.forward).
# --------------------------------------------------------------------------- #
def total_communicability_pool_forward(x, edge_index, w, b, *, K, ratio,
                                       edge_attr=None, batch=None):
    N, C = x.shape
    assert K >= 1, "total_com needs at least one propagation hop"
    if batch is None:
        batch = jnp.zeros((N,), dtype=jnp.int32)

    row, col = edge_index[0], edge_index[1]

    # score = score_layer(linearlayer(x), edge_index).squeeze()   -- Pallas
    score = graph_scores(x, edge_index, w, b, K=K)                 # [N]

    # perm = topk(score, ratio, batch)  (batch all-zeros => single graph)
    k_sel = int(math.ceil(ratio * N))
    _, perm = jax.lax.top_k(score, k_sel)
    perm = perm.astype(jnp.int32)

    # x = x[perm] * tanh(score[perm]).view(-1, 1)
    x_sel = jnp.take(x, perm, axis=0)
    s_sel = jnp.take(score, perm, axis=0)
    x_out = gate_selected(x_sel, s_sel)

    batch_out = jnp.take(batch, perm, axis=0)

    # filter_adj: keep edges whose endpoints both survived, relabel to [0,k_sel).
    # TODO(synk): torch_geometric's filter_adj compacts the edge list (dynamic
    #             shape); dropped edges are kept as -1 padding here instead.
    node_map = jnp.full((N,), -1, dtype=jnp.int32).at[perm].set(
        jnp.arange(k_sel, dtype=jnp.int32))
    new_row = node_map[row]
    new_col = node_map[col]
    valid = (new_row >= 0) & (new_col >= 0)
    edge_index_out = jnp.where(valid[None, :],
                               jnp.stack([new_row, new_col], axis=0), -1)
    edge_attr_out = None if edge_attr is None else jnp.where(
        valid[:, None], edge_attr, 0.0)

    return x_out, edge_index_out, edge_attr_out, batch_out, perm


# --------------------------------------------------------------------------- #
# Pure-JAX reference for the score path (loose numerical sanity check).
# --------------------------------------------------------------------------- #
def _reference_scores(x, edge_index, w, b, K):
    N, C = x.shape
    adj = jnp.zeros((N, N), jnp.float32).at[edge_index[0], edge_index[1]].set(1.0)
    s = x.astype(jnp.float32) @ jnp.asarray(w, jnp.float32).reshape(C) \
        + jnp.asarray(b, jnp.float32).reshape(())
    acc = s
    t = s
    for k in range(1, K + 1):
        t = (adj @ t) / float(k)
        acc = acc + t
    return acc


if __name__ == "__main__":
    key = jax.random.PRNGKey(0)
    N, C, E = 200, 64, 800        # nodes, in_channels, edges
    K_hops, ratio = 3, 0.5        # args.K, pooling ratio

    k1, k2, k3, k4, k5, k6 = jax.random.split(key, 6)
    x = jax.random.normal(k1, (N, C), dtype=jnp.float32)
    edge_index = jax.random.randint(k2, (2, E), 0, N, dtype=jnp.int32)
    # Deterministic Linear(in_channels, 1) parameters.
    w = (jax.random.normal(k3, (C, 1), dtype=jnp.float32) / jnp.sqrt(C)).astype(jnp.float32)
    b = (jax.random.normal(k4, (1, 1), dtype=jnp.float32) * 0.01).astype(jnp.float32)

    x_out, ei_out, ea_out, batch_out, perm = total_communicability_pool_forward(
        x, edge_index, w, b, K=K_hops, ratio=ratio)

    jax.block_until_ready(x_out)
    jax.block_until_ready(ei_out)
    jax.block_until_ready(batch_out)
    jax.block_until_ready(perm)

    # Check the Pallas score path (both resident-A and streaming-strip kernel
    # variants) against a pure-JAX reference.
    score_ref = _reference_scores(x, edge_index, w, b, K_hops)
    score_resident = jax.block_until_ready(
        graph_scores(x, edge_index, w, b, K=K_hops))
    score_stream = jax.block_until_ready(
        graph_scores(x, edge_index, w, b, K=K_hops, _force_stream_tn=128))
    assert bool(jnp.all(jnp.isfinite(x_out)))
    assert bool(jnp.allclose(score_resident, score_ref, rtol=5e-2, atol=5e-2))
    assert bool(jnp.allclose(score_stream, score_ref, rtol=5e-2, atol=5e-2))

    # Exercise the Pallas gate path (above the plain-JAX fallback threshold).
    xg = jax.random.normal(k5, (4096, 64), dtype=jnp.float32)
    sg = jax.random.normal(k6, (4096,), dtype=jnp.float32)
    g_pallas = jax.block_until_ready(gate_selected(xg, sg))
    g_ref = xg * jnp.tanh(sg)[:, None]
    assert bool(jnp.allclose(g_pallas, g_ref, rtol=1e-5, atol=1e-5))

    print("KERNEL_OK")
</pallas_src>

<mosaic_0001>
module attributes {stable_mosaic.version = 11 : i64} {
  func.func @_score_kernel(%arg0: i32, %arg1: i32, %arg2: memref<3xf32, #tpu.memory_space<smem>>, %arg3: memref<8x256xf32, #tpu.memory_space<vmem>>, %arg4: memref<256x256xbf16, #tpu.memory_space<any>>, %arg5: memref<8x256xf32, #tpu.memory_space<vmem>>, %arg6: memref<8x256xbf16, #tpu.memory_space<vmem>>, %arg7: memref<8x256xf32, #tpu.memory_space<vmem>>, %arg8: memref<8x256xf32, #tpu.memory_space<vmem>>, %arg9: memref<256x256xbf16, #tpu.memory_space<vmem>>, %arg10: memref<1x!tpu.dma_semaphore, #tpu.memory_space<semaphore_mem>>) attributes {dimension_semantics = [#tpu.dimension_semantics<arbitrary>, #tpu.dimension_semantics<arbitrary>], iteration_bounds = array<i64: 3, 1>, scalar_prefetch = 0 : i64, scratch_operands = 5 : i64, tpu.core_type = #tpu.core_type<tc>, window_params = [{transform_indices = @transform_0, window_bounds = array<i64: 3>}, {pipeline_mode = #tpu.pipeline_mode<synchronous>, transform_indices = @transform_1, window_bounds = array<i64: 8, 256>}, {}, {transform_indices = @transform_3, window_bounds = array<i64: 8, 256>}]} {
    %c0_i32 = arith.constant 0 : i32
    %0 = arith.cmpi eq, %arg0, %c0_i32 : i32
    %c0_i32_0 = arith.constant 0 : i32
    %1 = arith.cmpi eq, %arg1, %c0_i32_0 : i32
    %2 = arith.andi %0, %1 : i1
    %3 = arith.extui %2 : i1 to i32
    %c0_i32_1 = arith.constant 0 : i32
    %4 = arith.cmpi ne, %3, %c0_i32_1 : i32
    scf.if %4 {
      %c0_i32_15 = arith.constant 0 : i32
      %30 = tpu.memref_slice %arg10[%c0_i32_15] : memref<1x!tpu.dma_semaphore, #tpu.memory_space<semaphore_mem>> -> memref<1x!tpu.dma_semaphore, #tpu.memory_space<semaphore_mem>>
      %31 = tpu.memref_squeeze %30 : memref<1x!tpu.dma_semaphore, #tpu.memory_space<semaphore_mem>> -> memref<!tpu.dma_semaphore, #tpu.memory_space<semaphore_mem>>
      tpu.enqueue_dma source(%arg4 : memref<256x256xbf16, #tpu.memory_space<any>>) target(%arg9 : memref<256x256xbf16, #tpu.memory_space<vmem>>) target_semaphore(%31 : memref<!tpu.dma_semaphore, #tpu.memory_space<semaphore_mem>>)
      %c0_i32_16 = arith.constant 0 : i32
      %32 = tpu.memref_slice %arg10[%c0_i32_16] : memref<1x!tpu.dma_semaphore, #tpu.memory_space<semaphore_mem>> -> memref<1x!tpu.dma_semaphore, #tpu.memory_space<semaphore_mem>>
      %33 = tpu.memref_squeeze %32 : memref<1x!tpu.dma_semaphore, #tpu.memory_space<semaphore_mem>> -> memref<!tpu.dma_semaphore, #tpu.memory_space<semaphore_mem>>
      tpu.wait_dma2 semaphore(%33 : memref<!tpu.dma_semaphore, #tpu.memory_space<semaphore_mem>>) src(%arg4 : memref<256x256xbf16, #tpu.memory_space<any>>) dst(%arg9 : memref<256x256xbf16, #tpu.memory_space<vmem>>)
    } else {
    }
    %c0_i32_2 = arith.constant 0 : i32
    %5 = arith.cmpi eq, %arg0, %c0_i32_2 : i32
    %c0_i32_3 = arith.constant 0 : i32
    %6 = arith.cmpi eq, %arg1, %c0_i32_3 : i32
    %7 = arith.andi %5, %6 : i1
    %8 = arith.extui %7 : i1 to i32
    %c0_i32_4 = arith.constant 0 : i32
    %9 = arith.cmpi ne, %8, %c0_i32_4 : i32
    scf.if %9 {
      %c0_15 = arith.constant 0 : index
      %c0_16 = arith.constant 0 : index
      %30 = vector.load %arg3[%c0_15, %c0_16] : memref<8x256xf32, #tpu.memory_space<vmem>>, vector<8x256xf32>
      %c0_17 = arith.constant 0 : index
      %c0_18 = arith.constant 0 : index
      %31 = vector.load %arg7[%c0_17, %c0_18] : memref<8x256xf32, #tpu.memory_space<vmem>>, vector<8x256xf32>
      tpu.vector_store %arg7[%c0_17, %c0_18], %30 {strides = array<i32>} : memref<8x256xf32, #tpu.memory_space<vmem>>, vector<8x256xf32>,
      %c0_19 = arith.constant 0 : index
      %c0_20 = arith.constant 0 : index
      %32 = vector.load %arg8[%c0_19, %c0_20] : memref<8x256xf32, #tpu.memory_space<vmem>>, vector<8x256xf32>
      tpu.vector_store %arg8[%c0_19, %c0_20], %30 {strides = array<i32>} : memref<8x256xf32, #tpu.memory_space<vmem>>, vector<8x256xf32>,
    } else {
    }
    %c0_i32_5 = arith.constant 0 : i32
    %10 = arith.cmpi eq, %arg1, %c0_i32_5 : i32
    %11 = arith.extui %10 : i1 to i32
    %c0_i32_6 = arith.constant 0 : i32
    %12 = arith.cmpi ne, %11, %c0_i32_6 : i32
    scf.if %12 {
      %c0_15 = arith.constant 0 : index
      %c0_16 = arith.constant 0 : index
      %30 = vector.load %arg7[%c0_15, %c0_16] : memref<8x256xf32, #tpu.memory_space<vmem>>, vector<8x256xf32>
      %31 = arith.truncf %30 : vector<8x256xf32> to vector<8x256xbf16>
      %c0_17 = arith.constant 0 : index
      %c0_18 = arith.constant 0 : index
      %32 = vector.load %arg6[%c0_17, %c0_18] : memref<8x256xbf16, #tpu.memory_space<vmem>>, vector<8x256xbf16>
      tpu.vector_store %arg6[%c0_17, %c0_18], %31 {strides = array<i32>} : memref<8x256xbf16, #tpu.memory_space<vmem>>, vector<8x256xbf16>,
    } else {
    }
    %13 = arith.index_cast %arg0 : i32 to index
    %14 = memref.load %arg2[%13] : memref<3xf32, #tpu.memory_space<smem>>
    %c0 = arith.constant 0 : index
    %c0_7 = arith.constant 0 : index
    %15 = vector.load %arg6[%c0, %c0_7] : memref<8x256xbf16, #tpu.memory_space<vmem>>, vector<8x256xbf16>
    %c0_8 = arith.constant 0 : index
    %c0_9 = arith.constant 0 : index
    %16 = vector.load %arg9[%c0_8, %c0_9] : memref<256x256xbf16, #tpu.memory_space<vmem>>, vector<256x256xbf16>
    %cst = arith.constant dense<0.000000e+00> : vector<8x256xf32>
    %17 = tpu.matmul %15, %16, %cst {dimension_numbers = #tpu.dot_dimension_numbers<[1], [0], [0], [1], [0, 0, 1, 1], [], []>} : vector<8x256xbf16>, vector<256x256xbf16>, vector<8x256xf32> -> vector<8x256xf32>
    %18 = vector.broadcast %14 : f32 to vector<8x256xf32>
    %19 = arith.mulf %17, %18 : vector<8x256xf32>
    %c256_i32 = arith.constant 256 : i32
    %20 = arith.muli %arg1, %c256_i32 : i32
    %21 = tpu.assume_multiple %20, 128 : i32
    %c0_10 = arith.constant 0 : index
    %22 = arith.index_cast %21 : i32 to index
    %23 = vector.load %arg8[%c0_10, %22] : memref<8x256xf32, #tpu.memory_space<vmem>>, vector<8x256xf32>
    %24 = arith.addf %23, %19 : vector<8x256xf32>
    %c0_11 = arith.constant 0 : index
    %25 = arith.index_cast %21 : i32 to index
    %26 = vector.load %arg7[%c0_11, %25] : memref<8x256xf32, #tpu.memory_space<vmem>>, vector<8x256xf32>
    tpu.vector_store %arg7[%c0_11, %25], %19 {strides = array<i32>} : memref<8x256xf32, #tpu.memory_space<vmem>>, vector<8x256xf32>,
    %c0_12 = arith.constant 0 : index
    %27 = arith.index_cast %21 : i32 to index
    %28 = vector.load %arg8[%c0_12, %27] : memref<8x256xf32, #tpu.memory_space<vmem>>, vector<8x256xf32>
    tpu.vector_store %arg8[%c0_12, %27], %24 {strides = array<i32>} : memref<8x256xf32, #tpu.memory_space<vmem>>, vector<8x256xf32>,
    %c0_13 = arith.constant 0 : index
    %c0_14 = arith.constant 0 : index
    %29 = vector.load %arg5[%c0_13, %c0_14] : memref<8x256xf32, #tpu.memory_space<vmem>>, vector<8x256xf32>
    tpu.vector_store %arg5[%c0_13, %c0_14], %24 {strides = array<i32>} : memref<8x256xf32, #tpu.memory_space<vmem>>, vector<8x256xf32>,
    return
  }
  func.func @transform_0(%arg0: i32, %arg1: i32) -> i32 {
    %c0_i32 = arith.constant 0 : i32
    %c0_i32_0 = arith.constant 0 : i32
    return %c0_i32 : i32
  }
  func.func @transform_1(%arg0: i32, %arg1: i32) -> (i32, i32) {
    %c0_i32 = arith.constant 0 : i32
    %c0_i32_0 = arith.constant 0 : i32
    %c0_i32_1 = arith.constant 0 : i32
    return %c0_i32, %c0_i32_0 : i32, i32
  }
  func.func @transform_3(%arg0: i32, %arg1: i32) -> (i32, i32) {
    %c0_i32 = arith.constant 0 : i32
    %c0_i32_0 = arith.constant 0 : i32
    return %c0_i32, %arg1 : i32, i32
  }
}

</mosaic_0001>

<llo_original>
// kernel: tpu_custom_call.1
$region0: #{tpu_custom_call.1}
  #allocation0 [shape = 'u32[]', space=smem, size = 0x4, offset = 0x4, fixed_abs, tag = 'smem constant byte address 0x4 - core index']
  #allocation1 [shape = 'u32[144,128]{1,0:T(1,128)}', space=vmem, size = 0x12000, scoped, tag = 'internal scratch']
  #allocation2 [shape = 'bf16[8,256]{1,0:T(8,128)(2,1)}', space=vmem, size = 0x1000, scoped, tag = 'scratch operand']
  #allocation3 [shape = 'f32[8,256]{1,0:T(8,128)}', space=vmem, size = 0x2000, scoped, tag = 'scratch operand']
  #allocation4 [shape = 'f32[8,256]{1,0:T(8,128)}', space=vmem, size = 0x2000, scoped, tag = 'scratch operand']
  #allocation5 [shape = 'bf16[256,256]{1,0:T(8,128)(2,1)}', space=vmem, size = 0x20000, scoped, tag = 'scratch operand']
  #allocation6 [shape = 's32[1]{0}', space=sflag, size = 0x4, scoped, tag = 'scratch operand']
  #allocation13 [shape = 's32[]', space=sflag, size = 0x4, offset = 0, fixed_abs, tag = 'sflag constant byte address 0x0 - dummy sync flag']
  #allocation14 [shape = 's32[]', space=sflag, size = 0x4, offset = 0, fixed_abs, tag = 'sflag constant byte address 0x0 - dummy sync flag']
  #allocation15 [shape = 'u32[]', space=smem, size = 0x4, offset = 0x44, fixed_abs, tag = 'smem constant byte address 0x44 - assertion arg 0']
  #allocation16 [shape = 'u32[]', space=smem, size = 0x4, offset = 0x48, fixed_abs, tag = 'smem constant byte address 0x48 - assertion arg 1']
  %s0 = inlined_call_operand.hbm [shape: f32[3], index: 0, kind: input, shape index: {}]
  %s1 = inlined_call_operand.hbm [shape: f32[8,256], index: 1, kind: input, shape index: {}]
  %s2 = inlined_call_operand.hbm [shape: bf16[256,256], index: 2, kind: input, shape index: {}]
  %s3 = inlined_call_operand.hbm [shape: f32[8,256], index: 3, kind: output, shape index: {}]
  %s4 = sld [smem:[#allocation0]]
  $region61: #{tpu_custom_call.1} parent=0
    _
  %s6 = ssub.s32 1, %s4
  %s7 = scalar_select 0, %s6, %s4
  $region1: #{tpu_custom_call.1} parent=0
    #allocation7 [shape = 'u8[512]{0}', space=smem, size = 0x200, scoped, tag = 'input window, operand 0, single buffered']
    #allocation8 [shape = 's32[2]{0}', space=sflag, size = 0x8, scoped, tag = 'scoped memory for tpu_custom_call.1']
    #allocation9 [shape = 's32[2]{0}', space=sflag, size = 0x8, scoped, tag = 'scoped memory for tpu_custom_call.1']
    #allocation10 [shape = 's32[2]{0}', space=sflag, size = 0x8, scoped, tag = 'scoped memory for tpu_custom_call.1']
    #allocation11 [shape = 'u8[8192]{0}', space=vmem, size = 0x2000, scoped, tag = 'input window, operand 1, single buffered']
    #allocation12 [shape = 'u8[8192]{0}', space=vmem, size = 0x2000, scoped, tag = 'output window, operand 0, single buffered']
    %8 = vsyncpa [#allocation10], 0
    %9 = vsyncpa [#allocation8], 0
    %10 = vsyncpa [#allocation9], 0
    loop: start=0, step=1, limit=5
    $region2: #{tpu_custom_call.1} parent=1 // loop_pre_header
      _
    $region3: #{tpu_custom_call.1} parent=1 // loop_header
      %s12 = sphi 0, %s16
      %p13 = scmp.ge.s32.totalorder %s12, 5
      %s19 = sphi 0, %s31
      %s20 = sphi 0, %s27
      %s21 = sphi 0, %s19
      %s22 = sphi 0, %s20
      %s23 = sphi 0, %s21
      %s24 = sphi 0, %s22
      %s32 = sphi 0, %s32
      %s34 = sphi 0, %s32
      %s35 = sphi 0, %s34
      %s49 = sphi 0, %s35
      %s53 = sphi 0, %s53
      %s55 = sphi 0, %s53
      %s56 = sphi 0, %s55
      %s70 = sphi 0, %s56
      %s76 = sphi 0, %s78
      %s79 = sphi 0, %s76
      %s80 = sphi 0, %s79
      %s96 = sphi 0, %s80
    $region4: #{tpu_custom_call.1} parent=1 // loop_header_branch
      %15 = sbr.rel (%p13) target = $region8
    $region5: #{tpu_custom_call.1} parent=1 // loop_body
      %s17 = ssub.s32 %s12, 1
      %s18 = ssub.s32 %s12, 2
      %s25 = sadd.s32 1, %s20
      %p26 = scmp.ge.s32.totalorder %s25, 1
      %s27 = scalar_select %p26, 0, %s25
      %s28 = sadd.s32 1, %s19
      %s29 = scalar_select %p26, %s28, %s19
      %p30 = scmp.ge.s32.totalorder %s29, 3
      %s31 = scalar_select %p30, 0, %s29
      %s33 = sadd.s32 %s32, 1
      %p36 = scmp.eq.s32.totalorder %s12, 2
      %p37 = scmp.ne.s32.totalorder %s32, %s34
      %p38 = scmp.eq.s32.totalorder %s12, 0
      %p39 = por %p37, %p38
      %p40 = scmp.ne.s32.totalorder %s32, %s34
      %p41 = scmp.eq.s32.totalorder %s17, 2
      %p42 = por %p40, %p41
      %p43 = scmp.ne.s32.totalorder %s34, %s35
      %p44 = scmp.eq.s32.totalorder %s17, 0
      %p45 = por %p43, %p44
      %p46 = scmp.ne.s32.totalorder %s34, %s35
      %p47 = scmp.eq.s32.totalorder %s18, 2
      %p48 = por %p46, %p47
      %p50 = scmp.ne.s32.totalorder %s35, %s49
      %p51 = scmp.eq.s32.totalorder %s18, 0
      %p52 = por %p50, %p51
      %s54 = sadd.s32 %s53, 1
      %p57 = scmp.eq.s32.totalorder %s12, 2
      %p58 = scmp.ne.s32.totalorder %s53, %s55
      %p59 = scmp.eq.s32.totalorder %s12, 0
      %p60 = por %p58, %p59
      %p61 = scmp.ne.s32.totalorder %s53, %s55
      %p62 = scmp.eq.s32.totalorder %s17, 2
      %p63 = por %p61, %p62
      %p64 = scmp.ne.s32.totalorder %s55, %s56
      %p65 = scmp.eq.s32.totalorder %s17, 0
      %p66 = por %p64, %p65
      %p67 = scmp.ne.s32.totalorder %s55, %s56
      %p68 = scmp.eq.s32.totalorder %s18, 2
      %p69 = por %p67, %p68
      %p71 = scmp.ne.s32.totalorder %s56, %s70
      %p72 = scmp.eq.s32.totalorder %s18, 0
      %p73 = por %p71, %p72
      %s74 = ssub.s32 %s20, %s27
      %p75 = scmp.eq.s32.totalorder %s74, 0
      %s77 = sadd.s32 %s76, 1
      %s78 = scalar_select %p75, %s76, %s77
      %p81 = pneg %p75
      %p82 = scmp.eq.s32.totalorder %s12, 2
      %p83 = por %p81, %p82
      %p84 = scmp.ne.s32.totalorder %s76, %s79
      %p85 = scmp.eq.s32.totalorder %s12, 0
      %p86 = por %p84, %p85
      %p87 = scmp.ne.s32.totalorder %s76, %s79
      %p88 = scmp.eq.s32.totalorder %s17, 2
      %p89 = por %p87, %p88
      %p90 = scmp.ne.s32.totalorder %s79, %s80
      %p91 = scmp.eq.s32.totalorder %s17, 0
      %p92 = por %p90, %p91
      %p93 = scmp.ne.s32.totalorder %s79, %s80
      %p94 = scmp.eq.s32.totalorder %s18, 2
      %p95 = por %p93, %p94
      %p97 = scmp.ne.s32.totalorder %s80, %s96
      %p98 = scmp.eq.s32.totalorder %s18, 0
      %p99 = por %p97, %p98
      %p100 = scmp.le.s32.totalorder 1, %s12
      %p101 = scmp.lt.s32.totalorder %s12, 4
      %p102 = pnand %p100, %p101
      %p103 = pneg %p102
      // Predicated region
      $region9: #{tpu_custom_call.1} parent=5 // pred_check
        _
      $region10: #{tpu_custom_call.1} parent=5 // pred_check_branch
        %105 = sbr.rel (%p102) target = $region12
      $region11: #{tpu_custom_call.1} parent=5 // pred_region
        %s106 = ssub.s32 %s12, 1
        // Predicated region
        $region13: #{tpu_custom_call.1} parent=11 // pred_check
          %p107 = pneg %p45
        $region14: #{tpu_custom_call.1} parent=11 // pred_check_branch
          %109 = sbr.rel (%p107) target = $region16
        $region15: #{tpu_custom_call.1} parent=11 // pred_region
          %s111 = ssub.s32 16, 16
          %112 = vsyncadd [#allocation10], %s111
          %115 = dma.hbm_to_smem %s0, 16, [#allocation7], [#allocation10]
        $region16: #{tpu_custom_call.1} parent=11 // pred_fallthru
          _
        // Predicated region
        $region17: #{tpu_custom_call.1} parent=11 // pred_check
          %p116 = pneg %p66
        $region18: #{tpu_custom_call.1} parent=11 // pred_check_branch
          %118 = sbr.rel (%p116) target = $region20
        $region19: #{tpu_custom_call.1} parent=11 // pred_region
          %s120 = ssub.s32 256, 256
          %121 = vsyncadd [#allocation8], %s120
          %s123 = sshll.u32 [#allocation11], 4
          %s124 = int_to_ptr.vmem [resolvable:$true] %s123
          %126 = dma.hbm_to_vmem [thread:$0]  %s1, 256, %s124, [#allocation8]
        $region20: #{tpu_custom_call.1} parent=11 // pred_fallthru
          _
      $region12: #{tpu_custom_call.1} parent=5 // pred_fallthru
        _
      %p127 = scmp.lt.s32.totalorder %s12, 3
      // Predicated region
      $region21: #{tpu_custom_call.1} parent=5 // pred_check
        %p128 = pneg %p127
      $region22: #{tpu_custom_call.1} parent=5 // pred_check_branch
        %130 = sbr.rel (%p128) target = $region24
      $region23: #{tpu_custom_call.1} parent=5 // pred_region
        _
      $region24: #{tpu_custom_call.1} parent=5 // pred_fallthru
        _
      %p131 = scmp.le.s32.totalorder 1, %s12
      %p132 = scmp.lt.s32.totalorder %s12, 4
      %p133 = pnand %p131, %p132
      %p134 = pneg %p133
      // Predicated region
      $region25: #{tpu_custom_call.1} parent=5 // pred_check
        _
      $region26: #{tpu_custom_call.1} parent=5 // pred_check_branch
        %136 = sbr.rel (%p133) target = $region28
      $region27: #{tpu_custom_call.1} parent=5 // pred_region
        %s137 = ssub.s32 %s12, 1
        // Predicated region
        $region29: #{tpu_custom_call.1} parent=27 // pred_check
          %p138 = pneg %p45
        $region30: #{tpu_custom_call.1} parent=27 // pred_check_branch
          %140 = sbr.rel (%p138) target = $region32
        $region31: #{tpu_custom_call.1} parent=27 // pred_region
          %141 = dma.done [#allocation10], 16
        $region32: #{tpu_custom_call.1} parent=27 // pred_fallthru
          _
        // Predicated region
        $region33: #{tpu_custom_call.1} parent=27 // pred_check
          %p142 = pneg %p66
        $region34: #{tpu_custom_call.1} parent=27 // pred_check_branch
          %144 = sbr.rel (%p142) target = $region36
        $region35: #{tpu_custom_call.1} parent=27 // pred_region
          %145 = dma.done [#allocation8], 256
        $region36: #{tpu_custom_call.1} parent=27 // pred_fallthru
          _
        %146 = sfence
        %p147 = pneg %p45
        %p148 = pneg %p42
        %p149 = pneg %p66
        %p150 = pneg %p63
        %p151 = pneg %p92
        %p152 = pneg %p89
        %s153 = smul.u32 2, %s22
        %p154 = scmp.eq.s32.totalorder %s21, 0
        %p155 = scmp.eq.s32.totalorder %s22, 0
        %p156 = pnand %p154, %p155
        %p157 = pneg %p156
        // Predicated region
        $region37: #{tpu_custom_call.1} parent=27 // pred_check
          _
        $region38: #{tpu_custom_call.1} parent=27 // pred_check_branch
          %159 = sbr.rel (%p156) target = $region40
        $region39: #{tpu_custom_call.1} parent=27 // pred_region
          // Predicated region
          $region41: #{tpu_custom_call.1} parent=39 // pred_check
            _
          $region42: #{tpu_custom_call.1} parent=39 // pred_check_branch
            %161 = sbr.rel target = $region44
          $region43: #{tpu_custom_call.1} parent=39 // pred_region
            %162 = sst [smem:[#allocation15]] [#allocation14]
            %163 = sst [smem:[#allocation16]] [#allocation13]
          $region44: #{tpu_custom_call.1} parent=39 // pred_fallthru
            _
          %165 = shalt.err (0)
          %s167 = sshll.u32 [#allocation5], 4
          %s168 = int_to_ptr.vmem [resolvable:$true] %s167
          %170 = dma.hbm_to_vmem [thread:$0]  %s2, 4096, %s168, [#allocation6]
          %s171 = smul.u32 4, 32
          %s172 = smul.u32 %s171, 2
          %s173 = sshll.u32 %s172, 4
          %174 = dma.done [#allocation6], %s173
          %v175 = vld [vmem:[#allocation11] sm:$0xff]
          %v176 = vld [vmem:[#allocation11 + $0x8] sm:$0xff]
          %177 = vst [vmem:[#allocation3] sm:$0xff] %v175
          %178 = vst [vmem:[#allocation3 + $0x8] sm:$0xff] %v176
          %179 = vst [vmem:[#allocation4] sm:$0xff] %v175
          %180 = vst [vmem:[#allocation4 + $0x8] sm:$0xff] %v176
        $region40: #{tpu_custom_call.1} parent=27 // pred_fallthru
          _
        // Predicated region
        $region45: #{tpu_custom_call.1} parent=27 // pred_check
          %p181 = pneg %p155
        $region46: #{tpu_custom_call.1} parent=27 // pred_check_branch
          %183 = sbr.rel (%p181) target = $region48
        $region47: #{tpu_custom_call.1} parent=27 // pred_region
          %v184 = vld [vmem:[#allocation3] sm:$0xff]
          %v185 = vld [vmem:[#allocation3 + $0x8] sm:$0xff]
          %v186 = vpack.c.bf16 %v184, %v184
          %v187 = vpack.c.bf16 %v185, %v185
          %v190 = vunpack.c.l.b16 %v186
          %v191 = vunpack.c.l.b16 %v187
          %v192 = vpack.c.b16 %v191, %v190
          %194 = vst [vmem:[#allocation2] sm:$0xff] %v192
        $region48: #{tpu_custom_call.1} parent=27 // pred_fallthru
          _
        %s195 = sld [smem:[#allocation7 + %s21]]
        %v196 = vld [vmem:[#allocation2] sm:$0xff]
        %v197 = vld [vmem:[#allocation5] sm:$0xff]
        %v198 = vld [vmem:[#allocation5 + $0x8] sm:$0xff]
        %v199 = vld [vmem:[#allocation5 + $0x10] sm:$0xff]
        %v200 = vld [vmem:[#allocation5 + $0x18] sm:$0xff]
        %v201 = vld [vmem:[#allocation5 + $0x20] sm:$0xff]
        %v202 = vld [vmem:[#allocation5 + $0x28] sm:$0xff]
        %v203 = vld [vmem:[#allocation5 + $0x30] sm:$0xff]
        %v204 = vld [vmem:[#allocation5 + $0x38] sm:$0xff]
        %v205 = vld [vmem:[#allocation5 + $0x40] sm:$0xff]
        %v206 = vld [vmem:[#allocation5 + $0x48] sm:$0xff]
        %v207 = vld [vmem:[#allocation5 + $0x50] sm:$0xff]
        %v208 = vld [vmem:[#allocation5 + $0x58] sm:$0xff]
        %v209 = vld [vmem:[#allocation5 + $0x60] sm:$0xff]
        %v210 = vld [vmem:[#allocation5 + $0x68] sm:$0xff]
        %v211 = vld [vmem:[#allocation5 + $0x70] sm:$0xff]
        %v212 = vld [vmem:[#allocation5 + $0x78] sm:$0xff]
        %v213 = vld [vmem:[#allocation5 + $0x80] sm:$0xff]
        %v214 = vld [vmem:[#allocation5 + $0x88] sm:$0xff]
        %v215 = vld [vmem:[#allocation5 + $0x90] sm:$0xff]
        %v216 = vld [vmem:[#allocation5 + $0x98] sm:$0xff]
        %v217 = vld [vmem:[#allocation5 + $0xa0] sm:$0xff]
        %v218 = vld [vmem:[#allocation5 + $0xa8] sm:$0xff]
        %v219 = vld [vmem:[#allocation5 + $0xb0] sm:$0xff]
        %v220 = vld [vmem:[#allocation5 + $0xb8] sm:$0xff]
        %v221 = vld [vmem:[#allocation5 + $0xc0] sm:$0xff]
        %v222 = vld [vmem:[#allocation5 + $0xc8] sm:$0xff]
        %v223 = vld [vmem:[#allocation5 + $0xd0] sm:$0xff]
        %v224 = vld [vmem:[#allocation5 + $0xd8] sm:$0xff]
        %v225 = vld [vmem:[#allocation5 + $0xe0] sm:$0xff]
        %v226 = vld [vmem:[#allocation5 + $0xe8] sm:$0xff]
        %v227 = vld [vmem:[#allocation5 + $0xf0] sm:$0xff]
        %v228 = vld [vmem:[#allocation5 + $0xf8] sm:$0xff]
        %v230 = vunpack.c.l.b16 %v196
        %v231 = vunpack.c.h.b16 %v196
        %v232 = vpack.c.b16 %v230, %v230
        %v233 = vpack.c.b16 %v231, %v231
        %v268 = vunpack.c.l.b16 %v197
        %v269 = vunpack.c.h.b16 %v197
        %v270 = vunpack.c.l.b16 %v198
        %v271 = vunpack.c.h.b16 %v198
        %v272 = vunpack.c.l.b16 %v199
        %v273 = vunpack.c.h.b16 %v199
        %v274 = vunpack.c.l.b16 %v200
        %v275 = vunpack.c.h.b16 %v200
        %v276 = vunpack.c.l.b16 %v201
        %v277 = vunpack.c.h.b16 %v201
        %v278 = vunpack.c.l.b16 %v202
        %v279 = vunpack.c.h.b16 %v202
        %v280 = vunpack.c.l.b16 %v203
        %v281 = vunpack.c.h.b16 %v203
        %v282 = vunpack.c.l.b16 %v204
        %v283 = vunpack.c.h.b16 %v204
        %v284 = vunpack.c.l.b16 %v205
        %v285 = vunpack.c.h.b16 %v205
        %v286 = vunpack.c.l.b16 %v206
        %v287 = vunpack.c.h.b16 %v206
        %v288 = vunpack.c.l.b16 %v207
        %v289 = vunpack.c.h.b16 %v207
        %v290 = vunpack.c.l.b16 %v208
        %v291 = vunpack.c.h.b16 %v208
        %v292 = vunpack.c.l.b16 %v209
        %v293 = vunpack.c.h.b16 %v209
        %v294 = vunpack.c.l.b16 %v210
        %v295 = vunpack.c.h.b16 %v210
        %v296 = vunpack.c.l.b16 %v211
        %v297 = vunpack.c.h.b16 %v211
        %v298 = vunpack.c.l.b16 %v212
        %v299 = vunpack.c.h.b16 %v212
        %v300 = vunpack.c.l.b16 %v213
        %v301 = vunpack.c.h.b16 %v213
        %v302 = vunpack.c.l.b16 %v214
        %v303 = vunpack.c.h.b16 %v214
        %v304 = vunpack.c.l.b16 %v215
        %v305 = vunpack.c.h.b16 %v215
        %v306 = vunpack.c.l.b16 %v216
        %v307 = vunpack.c.h.b16 %v216
        %v308 = vunpack.c.l.b16 %v217
        %v309 = vunpack.c.h.b16 %v217
        %v310 = vunpack.c.l.b16 %v218
        %v311 = vunpack.c.h.b16 %v218
        %v312 = vunpack.c.l.b16 %v219
        %v313 = vunpack.c.h.b16 %v219
        %v314 = vunpack.c.l.b16 %v220
        %v315 = vunpack.c.h.b16 %v220
        %v316 = vunpack.c.l.b16 %v221
        %v317 = vunpack.c.h.b16 %v221
        %v318 = vunpack.c.l.b16 %v222
        %v319 = vunpack.c.h.b16 %v222
        %v320 = vunpack.c.l.b16 %v223
        %v321 = vunpack.c.h.b16 %v223
        %v322 = vunpack.c.l.b16 %v224
        %v323 = vunpack.c.h.b16 %v224
        %v324 = vunpack.c.l.b16 %v225
        %v325 = vunpack.c.h.b16 %v225
        %v326 = vunpack.c.l.b16 %v226
        %v327 = vunpack.c.h.b16 %v226
        %v328 = vunpack.c.l.b16 %v227
        %v329 = vunpack.c.h.b16 %v227
        %v330 = vunpack.c.l.b16 %v228
        %v331 = vunpack.c.h.b16 %v228
        %v332 = vpack.c.b16 %v270, %v268
        %v333 = vpack.c.b16 %v271, %v269
        %v334 = vpack.c.b16 %v274, %v272
        %v335 = vpack.c.b16 %v275, %v273
        %v336 = vpack.c.b16 %v278, %v276
        %v337 = vpack.c.b16 %v279, %v277
        %v338 = vpack.c.b16 %v282, %v280
        %v339 = vpack.c.b16 %v283, %v281
        %v340 = vpack.c.b16 %v286, %v284
        %v341 = vpack.c.b16 %v287, %v285
        %v342 = vpack.c.b16 %v290, %v288
        %v343 = vpack.c.b16 %v291, %v289
        %v344 = vpack.c.b16 %v294, %v292
        %v345 = vpack.c.b16 %v295, %v293
        %v346 = vpack.c.b16 %v298, %v296
        %v347 = vpack.c.b16 %v299, %v297
        %v348 = vpack.c.b16 %v302, %v300
        %v349 = vpack.c.b16 %v303, %v301
        %v350 = vpack.c.b16 %v306, %v304
        %v351 = vpack.c.b16 %v307, %v305
        %v352 = vpack.c.b16 %v310, %v308
        %v353 = vpack.c.b16 %v311, %v309
        %v354 = vpack.c.b16 %v314, %v312
        %v355 = vpack.c.b16 %v315, %v313
        %v356 = vpack.c.b16 %v318, %v316
        %v357 = vpack.c.b16 %v319, %v317
        %v358 = vpack.c.b16 %v322, %v320
        %v359 = vpack.c.b16 %v323, %v321
        %v360 = vpack.c.b16 %v326, %v324
        %v361 = vpack.c.b16 %v327, %v325
        %v362 = vpack.c.b16 %v330, %v328
        %v363 = vpack.c.b16 %v331, %v329
        %396 = vmatprep.subr.bf16.mxu0 %v347
        %397 = vmatpush1.bf16.msra.mxu0 %v346
        %398 = vmatprep.subr.bf16.mxu0 %v345
        %399 = vmatpush1.bf16.msra.mxu0 %v344
        %400 = vmatprep.subr.bf16.mxu0 %v343
        %401 = vmatpush1.bf16.msra.mxu0 %v342
        %402 = vmatprep.subr.bf16.mxu0 %v341
        %403 = vmatpush1.bf16.msra.mxu0 %v340
        %404 = vmatprep.subr.bf16.mxu0 %v339
        %405 = vmatpush1.bf16.msra.mxu0 %v338
        %406 = vmatprep.subr.bf16.mxu0 %v337
        %407 = vmatpush1.bf16.msra.mxu0 %v336
        %408 = vmatprep.subr.bf16.mxu0 %v335
        %409 = vmatpush1.bf16.msra.mxu0 %v334
        %410 = vmatprep.subr.bf16.mxu0 %v333
        %411 = vmatpush1.bf16.msra.mxu0 %v332
        %412 = vmatprep.subr.bf16.mxu0 %v363
        %413 = vmatpush2.bf16.msra.mxu0 %v362
        %414 = vmatprep.subr.bf16.mxu0 %v361
        %415 = vmatpush2.bf16.msra.mxu0 %v360
        %416 = vmatprep.subr.bf16.mxu0 %v359
        %417 = vmatpush2.bf16.msra.mxu0 %v358
        %418 = vmatprep.subr.bf16.mxu0 %v357
        %419 = vmatpush2.bf16.msra.mxu0 %v356
        %420 = vmatprep.subr.bf16.mxu0 %v355
        %421 = vmatpush2.bf16.msra.mxu0 %v354
        %422 = vmatprep.subr.bf16.mxu0 %v353
        %423 = vmatpush2.bf16.msra.mxu0 %v352
        %424 = vmatprep.subr.bf16.mxu0 %v351
        %425 = vmatpush2.bf16.msra.mxu0 %v350
        %426 = vmatprep.subr.bf16.mxu0 %v349
        %427 = vmatpush2.bf16.msra.mxu0 %v348
        %428 = vmatprep.mubr.bf16.mxu0 %v233
        %429 = vmatmul.mubr.bf16.gmra.mxu0 %v232
        %v430 = vpop.f32.mrf.mxu0
        %v431 = vadd.f32 0.0, %v430
        %v432 = vpop.f32.mrf.mxu0
        %v433 = vadd.f32 0.0, %v432
        %v434 = vpop.f32.mrf.mxu0
        %v435 = vpop.f32.mrf.mxu0
        %436 = vdwg.mxu0
        %v437 = vstv %s195
        %v438 = vmul.f32 %v431, %v437
        %v439 = vmul.f32 %v433, %v437
        %s440 = smul.u32 %s22, 256
        %s441 = sshra.s32 %s440, 7
        %s442 = sand.u32 %s440, 127
        %s443 = smul.addr %s441, 8
        %s444 = scalar_lea.vmem [#allocation4], %s443
        %v445 = vld [vmem:[%s444] sm:$0xff]
        %v446 = vld [vmem:[%s444 + $0x8] sm:$0xff]
        %v447 = vadd.f32 %v445, %v438
        %v448 = vadd.f32 %v446, %v439
        %s449 = smul.addr %s441, 8
        %s450 = scalar_lea.vmem [#allocation3], %s449
        %451 = vst [vmem:[%s450] sm:$0xff] %v438
        %452 = vst [vmem:[%s450 + $0x8] sm:$0xff] %v439
        %453 = vst [vmem:[%s444] sm:$0xff] %v447
        %454 = vst [vmem:[%s444 + $0x8] sm:$0xff] %v448
        %455 = vst [vmem:[#allocation12] sm:$0xff] %v447
        %456 = vst [vmem:[#allocation12 + $0x8] sm:$0xff] %v448
        // Predicated region
        $region49: #{tpu_custom_call.1} parent=27 // pred_check
          %p457 = pneg %p89
        $region50: #{tpu_custom_call.1} parent=27 // pred_check_branch
          %459 = sbr.rel (%p457) target = $region52
        $region51: #{tpu_custom_call.1} parent=27 // pred_region
          %s460 = smul.u32 2, %s22
          %s462 = ssub.s32 256, 256
          %463 = vsyncadd [#allocation9], %s462
          %s464 = smul.addr %s460, 128
          %s465 = scalar_lea.hbm %s3, %s464
          %s467 = sshll.u32 [#allocation12], 4
          %s468 = int_to_ptr.vmem [resolvable:$true] %s467
          %470 = dma.vmem_to_hbm [thread:$0]  %s468, 256, %s465, [#allocation9]
        $region52: #{tpu_custom_call.1} parent=27 // pred_fallthru
          _
        // Predicated region
        $region53: #{tpu_custom_call.1} parent=27 // pred_check
          %p471 = pneg %p89
        $region54: #{tpu_custom_call.1} parent=27 // pred_check_branch
          %473 = sbr.rel (%p471) target = $region56
        $region55: #{tpu_custom_call.1} parent=27 // pred_region
          %474 = dma.done [#allocation9], 256
        $region56: #{tpu_custom_call.1} parent=27 // pred_fallthru
          _
      $region28: #{tpu_custom_call.1} parent=5 // pred_fallthru
        _
      %p475 = scmp.le.s32.totalorder 2, %s12
      // Predicated region
      $region57: #{tpu_custom_call.1} parent=5 // pred_check
        %p476 = pneg %p475
      $region58: #{tpu_custom_call.1} parent=5 // pred_check_branch
        %478 = sbr.rel (%p476) target = $region60
      $region59: #{tpu_custom_call.1} parent=5 // pred_region
        %s479 = ssub.s32 %s12, 2
      $region60: #{tpu_custom_call.1} parent=5 // pred_fallthru
        _
    $region6: #{tpu_custom_call.1} parent=1 // loop_footer
      %s16 = sadd.s32 1, %s12
    $region7: #{tpu_custom_call.1} parent=1 // loop_footer_branch
      %11 = sbr.rel target = $region3
    $region8: #{tpu_custom_call.1} parent=1 // loop_exit
      _
    %480 = vsyncpa [#allocation8], 1
    %s481 = scalar_lea.sflag [#allocation8], 1
    %482 = vsyncpa %s481, 1
    %483 = vsyncpa [#allocation9], 1
    %s484 = scalar_lea.sflag [#allocation9], 1
    %485 = vsyncpa %s484, 1
    %486 = vsyncpa [#allocation10], 1
    %s487 = scalar_lea.sflag [#allocation10], 1
    %488 = vsyncpa %s487, 1
  %489 = vsyncmov [#allocation6]
  %s490 = vpop.sfrf %489
  %p491 = scmp.eq.s32.totalorder %s490, 0
  %p492 = pneg %p491
  %494 = shalt.err (%p492)

</llo_original>
